<compile_context>
chip_gen: v7x
topology: tpu7x:2x2x1
jax: 0.10.0
libtpu: 0.0.40
codegen_flags: <defaults>
</compile_context>

<pallas_src>
import jax
import jax.numpy as jnp
from jax.experimental import pallas as pl
from jax.experimental.pallas import tpu as pltpu


def make_mlp_kernel(n_linear):
    """Fused-MLP kernel for `n_linear` Linear layers (ReLU between hidden layers)."""

    def kernel(*refs):
        # refs = (x_ref, w0, b0, w1, b1, ..., w_{L-1}, b_{L-1}, o_ref)
        x_ref = refs[0]
        o_ref = refs[-1]
        h = x_ref[...]

        # Hidden layers: MXU matmul in the weights' dtype (bf16 by default) with f32
        # accumulation; bias-add + ReLU in f32 on the VPU (v5e-safe).
        for l in range(n_linear - 1):
            w = refs[1 + 2 * l][...]                       # (fan_in, fan_out)
            b = refs[2 + 2 * l][...].astype(jnp.float32)   # (1, fan_out)
            h = jnp.dot(h.astype(w.dtype), w, preferred_element_type=jnp.float32)
            h = jnp.maximum(h + b, 0.0)

        # Final Linear(hidden, 1): VPU multiply + cross-lane reduce instead of a
        # degenerate N=1 MXU matmul.  h is already f32 after any hidden layer; the
        # astype only matters for the n_linear == 1 (no hidden layer) case.
        w_last = refs[1 + 2 * (n_linear - 1)][...].astype(jnp.float32)   # (1, hidden)
        b_last = refs[2 + 2 * (n_linear - 1)][...].astype(jnp.float32)   # (1, 1)
        v = jnp.sum(h.astype(jnp.float32) * w_last, axis=-1, keepdims=True) + b_last
        o_ref[...] = v.astype(o_ref.dtype)                               # (tile_b, 1)

    return kernel


def _round_up(x, m):
    return ((x + m - 1) // m) * m


def _choose_tile_b(B):
    if B <= 128:
        return B                                   # single step; splitting is pure overhead
    if B <= 256:
        return _round_up(-(-B // 2), 8)            # 2 steps -> both v7x TensorCores get work
    if B <= 1024:
        return 256                                 # 256-aligned: fills v6e/v7x MXU rows
    return 1024                                    # big tiles amortize ~0.35us/step overhead


def value_critic2_forward(state, params, *, tile_b=None, compute_dtype=jnp.bfloat16):
    """state: (B, in_dim).  params: list of (W, b) with W (fan_in, fan_out), b (1, fan_out).

    Pass compute_dtype=jnp.float32 for exact f32 (torch-identical) matmul operands.
    Pass a bf16 `state` (from the producer) to halve input HBM traffic; no cast is added here.
    """
    B, in_dim = state.shape
    n_linear = len(params)
    if tile_b is None:
        tile_b = _choose_tile_b(B)

    num_tiles = pl.cdiv(B, tile_b)

    # Pack parameters: hidden weights in compute_dtype (bf16 halves HBM/VMEM bytes,
    # accumulation stays f32); last layer as a lane-dense (1, hidden) f32 row.
    flat = []
    for l, (w, b) in enumerate(params):
        if l == n_linear - 1:
            flat += [w.reshape(1, -1).astype(jnp.float32),
                     b.reshape(1, 1).astype(jnp.float32)]
        else:
            flat += [w.astype(compute_dtype),
                     b.reshape(1, -1).astype(jnp.float32)]

    in_specs = [pl.BlockSpec((tile_b, in_dim), lambda i: (i, 0))]
    for t in flat:
        # Constant index_map -> weight/bias blocks are resident across the whole grid.
        in_specs.append(pl.BlockSpec(t.shape, lambda i: (0, 0)))

    # Raise the scoped VMEM limit only when the estimate exceeds the conservative default;
    # cap at 48 MiB to leave headroom on v7x (64 MiB physical).
    x_bytes = state.dtype.itemsize
    est = (2 * tile_b * in_dim * x_bytes                               # input blocks (2 bufs)
           + 2 * tile_b * 4                                            # output blocks (2 bufs)
           + 2 * sum(t.size * t.dtype.itemsize for t in flat)          # weight blocks
           + 4 * tile_b * max([in_dim] + [t.shape[-1] for t in flat]) * 4)  # activations
    vmem_limit = None
    if est > 16 * 1024 * 1024:
        vmem_limit = min(max(int(est * 1.5), 32 * 1024 * 1024), 48 * 1024 * 1024)

    out = pl.pallas_call(
        make_mlp_kernel(n_linear),
        out_shape=jax.ShapeDtypeStruct((B, 1), jnp.float32),
        grid=(num_tiles,),
        in_specs=in_specs,
        out_specs=pl.BlockSpec((tile_b, 1), lambda i: (i, 0)),
        compiler_params=pltpu.CompilerParams(
            dimension_semantics=("parallel",),   # batch steps shard across v7x's 2 TCs
            vmem_limit_bytes=vmem_limit),
    )(state, *flat)

    return out


def init_params(key, in_dim, hidden_dim, n_layers):
    """Deterministic init mirroring torch.nn.Linear's U(-1/sqrt(fan_in), 1/sqrt(fan_in))."""
    dims = [in_dim] + [hidden_dim] * n_layers + [1]
    params = []
    for fan_in, fan_out in zip(dims[:-1], dims[1:]):
        key, kw, kb = jax.random.split(key, 3)
        bound = 1.0 / float(fan_in) ** 0.5
        w = jax.random.uniform(kw, (fan_in, fan_out), jnp.float32, -bound, bound)
        b = jax.random.uniform(kb, (1, fan_out), jnp.float32, -bound, bound)
        params.append((w, b))
    return params


def mlp_reference(state, params, compute_dtype=jnp.bfloat16):
    """Pure-JAX reference following the same dtype path as the kernel."""
    h = state.astype(jnp.float32)
    n_linear = len(params)
    for l, (w, b) in enumerate(params):
        if l < n_linear - 1:
            h = jnp.dot(h.astype(compute_dtype), w.astype(compute_dtype),
                        preferred_element_type=jnp.float32)
            h = jnp.maximum(h + b.reshape(1, -1).astype(jnp.float32), 0.0)
        else:
            h = (jnp.sum(h * w.reshape(1, -1).astype(jnp.float32), axis=-1, keepdims=True)
                 + b.reshape(1, 1).astype(jnp.float32))
    return h


if __name__ == "__main__":
    key = jax.random.PRNGKey(0)

    # 1) Small, module-consistent shapes: batch=16, in_dim=32, hidden=32, n_layers=2.
    #    -> single grid step (whole problem lives in VMEM).
    B, in_dim, hidden_dim, n_layers = 16, 32, 32, 2
    key, k_state, k_params = jax.random.split(key, 3)
    state = jax.random.normal(k_state, (B, in_dim), jnp.float32)
    params = init_params(k_params, in_dim, hidden_dim, n_layers)

    out = value_critic2_forward(state, params)
    jax.block_until_ready(out)
    ref = mlp_reference(state, params)
    assert out.shape == (B, 1)
    assert jnp.allclose(out, ref, atol=1e-3, rtol=1e-3), "small-case mismatch vs reference"

    # 2) Mid-size batch: 128 < B <= 256 -> split into 2 parallel steps (v7x dual-TC path),
    #    with a ragged boundary block (no host-side pad).
    B1, in1, hid1, nl1 = 200, 64, 128, 2
    key, k_s1, k_p1 = jax.random.split(key, 3)
    state1 = jax.random.normal(k_s1, (B1, in1), jnp.float32)
    params1 = init_params(k_p1, in1, hid1, nl1)

    out1 = value_critic2_forward(state1, params1)
    jax.block_until_ready(out1)
    ref1 = mlp_reference(state1, params1)
    assert out1.shape == (B1, 1)
    assert jnp.allclose(out1, ref1, atol=2e-3, rtol=2e-3), "mid-case mismatch vs reference"

    # 3) Larger case exercising the tiled path: non-multiple batch, 256-row tiles,
    #    4 parallel grid steps, hidden layers on the MXU in bf16, ragged last block.
    B2, in2, hid2, nl2 = 1000, 160, 128, 3
    key, k_state2, k_params2 = jax.random.split(key, 3)
    state2 = jax.random.normal(k_state2, (B2, in2), jnp.float32)
    params2 = init_params(k_params2, in2, hid2, nl2)

    out2 = value_critic2_forward(state2, params2)
    jax.block_until_ready(out2)
    ref2 = mlp_reference(state2, params2)
    assert out2.shape == (B2, 1)
    assert jnp.allclose(out2, ref2, atol=2e-3, rtol=2e-3), "tiled-case mismatch vs reference"

    print("KERNEL_OK")
</pallas_src>

<mosaic_0001>
module attributes {stable_mosaic.version = 11 : i64} {
  func.func @kernel(%arg0: i32, %arg1: memref<16x32xf32, #tpu.memory_space<vmem>>, %arg2: memref<32x32xbf16, #tpu.memory_space<vmem>>, %arg3: memref<1x32xf32, #tpu.memory_space<vmem>>, %arg4: memref<32x32xbf16, #tpu.memory_space<vmem>>, %arg5: memref<1x32xf32, #tpu.memory_space<vmem>>, %arg6: memref<1x32xf32, #tpu.memory_space<vmem>>, %arg7: memref<1x1xf32, #tpu.memory_space<vmem>>, %arg8: memref<16x1xf32, #tpu.memory_space<vmem>>) attributes {dimension_semantics = [#tpu.dimension_semantics<parallel>], iteration_bounds = array<i64: 1>, scalar_prefetch = 0 : i64, scratch_operands = 0 : i64, tpu.core_type = #tpu.core_type<tc>, window_params = [{transform_indices = @transform_0, window_bounds = array<i64: 16, 32>}, {pipeline_mode = #tpu.pipeline_mode<synchronous>, transform_indices = @transform_1, window_bounds = array<i64: 32, 32>}, {pipeline_mode = #tpu.pipeline_mode<synchronous>, transform_indices = @transform_2, window_bounds = array<i64: 1, 32>}, {pipeline_mode = #tpu.pipeline_mode<synchronous>, transform_indices = @transform_3, window_bounds = array<i64: 32, 32>}, {pipeline_mode = #tpu.pipeline_mode<synchronous>, transform_indices = @transform_4, window_bounds = array<i64: 1, 32>}, {pipeline_mode = #tpu.pipeline_mode<synchronous>, transform_indices = @transform_5, window_bounds = array<i64: 1, 32>}, {pipeline_mode = #tpu.pipeline_mode<synchronous>, transform_indices = @transform_6, window_bounds = array<i64: 1, 1>}, {transform_indices = @transform_7, window_bounds = array<i64: 16, 1>}]} {
    %c0 = arith.constant 0 : index
    %c0_0 = arith.constant 0 : index
    %0 = vector.load %arg1[%c0, %c0_0] : memref<16x32xf32, #tpu.memory_space<vmem>>, vector<16x32xf32>
    %c0_1 = arith.constant 0 : index
    %c0_2 = arith.constant 0 : index
    %1 = vector.load %arg2[%c0_1, %c0_2] : memref<32x32xbf16, #tpu.memory_space<vmem>>, vector<32x32xbf16>
    %c0_3 = arith.constant 0 : index
    %c0_4 = arith.constant 0 : index
    %2 = vector.load %arg3[%c0_3, %c0_4] : memref<1x32xf32, #tpu.memory_space<vmem>>, vector<1x32xf32>
    %3 = arith.truncf %0 : vector<16x32xf32> to vector<16x32xbf16>
    %cst = arith.constant dense<0.000000e+00> : vector<16x32xf32>
    %4 = tpu.matmul %3, %1, %cst {dimension_numbers = #tpu.dot_dimension_numbers<[1], [0], [0], [1], [0, 0, 1, 1], [], []>} : vector<16x32xbf16>, vector<32x32xbf16>, vector<16x32xf32> -> vector<16x32xf32>
    %5 = vector.broadcast %2 : vector<1x32xf32> to vector<16x32xf32>
    %6 = arith.addf %4, %5 : vector<16x32xf32>
    %cst_5 = arith.constant 0.000000e+00 : f32
    %7 = vector.broadcast %cst_5 : f32 to vector<16x32xf32>
    %8 = arith.maximumf %6, %7 : vector<16x32xf32>
    %c0_6 = arith.constant 0 : index
    %c0_7 = arith.constant 0 : index
    %9 = vector.load %arg4[%c0_6, %c0_7] : memref<32x32xbf16, #tpu.memory_space<vmem>>, vector<32x32xbf16>
    %c0_8 = arith.constant 0 : index
    %c0_9 = arith.constant 0 : index
    %10 = vector.load %arg5[%c0_8, %c0_9] : memref<1x32xf32, #tpu.memory_space<vmem>>, vector<1x32xf32>
    %11 = arith.truncf %8 : vector<16x32xf32> to vector<16x32xbf16>
    %cst_10 = arith.constant dense<0.000000e+00> : vector<16x32xf32>
    %12 = tpu.matmul %11, %9, %cst_10 {dimension_numbers = #tpu.dot_dimension_numbers<[1], [0], [0], [1], [0, 0, 1, 1], [], []>} : vector<16x32xbf16>, vector<32x32xbf16>, vector<16x32xf32> -> vector<16x32xf32>
    %13 = vector.broadcast %10 : vector<1x32xf32> to vector<16x32xf32>
    %14 = arith.addf %12, %13 : vector<16x32xf32>
    %cst_11 = arith.constant 0.000000e+00 : f32
    %15 = vector.broadcast %cst_11 : f32 to vector<16x32xf32>
    %16 = arith.maximumf %14, %15 : vector<16x32xf32>
    %c0_12 = arith.constant 0 : index
    %c0_13 = arith.constant 0 : index
    %17 = vector.load %arg6[%c0_12, %c0_13] : memref<1x32xf32, #tpu.memory_space<vmem>>, vector<1x32xf32>
    %c0_14 = arith.constant 0 : index
    %c0_15 = arith.constant 0 : index
    %18 = vector.load %arg7[%c0_14, %c0_15] : memref<1x1xf32, #tpu.memory_space<vmem>>, vector<1x1xf32>
    %19 = vector.broadcast %17 : vector<1x32xf32> to vector<16x32xf32>
    %20 = arith.mulf %16, %19 : vector<16x32xf32>
    %cst_16 = arith.constant dense<0.000000e+00> : vector<16xf32>
    %21 = vector.multi_reduction <add>, %20, %cst_16 [1] : vector<16x32xf32> to vector<16xf32>
    %22 = vector.shape_cast %21 : vector<16xf32> to vector<16x1xf32>
    %23 = vector.broadcast %18 : vector<1x1xf32> to vector<16x1xf32>
    %24 = arith.addf %22, %23 : vector<16x1xf32>
    %c0_17 = arith.constant 0 : index
    %c0_18 = arith.constant 0 : index
    %25 = vector.load %arg8[%c0_17, %c0_18] : memref<16x1xf32, #tpu.memory_space<vmem>>, vector<16x1xf32>
    tpu.vector_store %arg8[%c0_17, %c0_18], %24 {strides = array<i32>} : memref<16x1xf32, #tpu.memory_space<vmem>>, vector<16x1xf32>,
    return
  }
  func.func @transform_0(%arg0: i32) -> (i32, i32) {
    %c0_i32 = arith.constant 0 : i32
    %c0_i32_0 = arith.constant 0 : i32
    return %arg0, %c0_i32 : i32, i32
  }
  func.func @transform_1(%arg0: i32) -> (i32, i32) {
    %c0_i32 = arith.constant 0 : i32
    %c0_i32_0 = arith.constant 0 : i32
    %c0_i32_1 = arith.constant 0 : i32
    return %c0_i32, %c0_i32_0 : i32, i32
  }
  func.func @transform_2(%arg0: i32) -> (i32, i32) {
    %c0_i32 = arith.constant 0 : i32
    %c0_i32_0 = arith.constant 0 : i32
    %c0_i32_1 = arith.constant 0 : i32
    return %c0_i32, %c0_i32_0 : i32, i32
  }
  func.func @transform_3(%arg0: i32) -> (i32, i32) {
    %c0_i32 = arith.constant 0 : i32
    %c0_i32_0 = arith.constant 0 : i32
    %c0_i32_1 = arith.constant 0 : i32
    return %c0_i32, %c0_i32_0 : i32, i32
  }
  func.func @transform_4(%arg0: i32) -> (i32, i32) {
    %c0_i32 = arith.constant 0 : i32
    %c0_i32_0 = arith.constant 0 : i32
    %c0_i32_1 = arith.constant 0 : i32
    return %c0_i32, %c0_i32_0 : i32, i32
  }
  func.func @transform_5(%arg0: i32) -> (i32, i32) {
    %c0_i32 = arith.constant 0 : i32
    %c0_i32_0 = arith.constant 0 : i32
    %c0_i32_1 = arith.constant 0 : i32
    return %c0_i32, %c0_i32_0 : i32, i32
  }
  func.func @transform_6(%arg0: i32) -> (i32, i32) {
    %c0_i32 = arith.constant 0 : i32
    %c0_i32_0 = arith.constant 0 : i32
    %c0_i32_1 = arith.constant 0 : i32
    return %c0_i32, %c0_i32_0 : i32, i32
  }
  func.func @transform_7(%arg0: i32) -> (i32, i32) {
    %c0_i32 = arith.constant 0 : i32
    %c0_i32_0 = arith.constant 0 : i32
    return %arg0, %c0_i32 : i32, i32
  }
}

</mosaic_0001>

<llo_original>
// kernel: tpu_custom_call.1
$region0: #{tpu_custom_call.1}
  #allocation0 [shape = 'u32[]', space=smem, size = 0x4, offset = 0x4, fixed_abs, tag = 'smem constant byte address 0x4 - core index']
  #allocation1 [shape = 'u32[144,128]{1,0:T(1,128)}', space=vmem, size = 0x12000, scoped, tag = 'internal scratch']
  #allocation2 [shape = 'f32[1,1]{1,0:T(1,128)S(1)}', space=vmem, size = 0x200, scoped, tag = 'scoped memory for tpu_custom_call.1']
  %s0 = inlined_call_operand.hbm [shape: f32[16,32], index: 0, kind: input, shape index: {}]
  %s1 = inlined_call_operand.hbm [shape: bf16[32,32], index: 1, kind: input, shape index: {}]
  %s2 = inlined_call_operand.vmem [shape: f32[1,32], index: 2, kind: input, shape index: {}]
  %s3 = inlined_call_operand.hbm [shape: bf16[32,32], index: 3, kind: input, shape index: {}]
  %s4 = inlined_call_operand.vmem [shape: f32[1,32], index: 4, kind: input, shape index: {}]
  %s5 = inlined_call_operand.vmem [shape: f32[1,32], index: 5, kind: input, shape index: {}]
  %s6 = inlined_call_operand.<no memory space> [shape: f32[1,1], index: 6, kind: input, shape index: {}]
  %s7 = inlined_call_operand.vmem [shape: f32[16,1], index: 7, kind: output, shape index: {}]
  %s8 = sld [smem:[#allocation0]]
  $region50: #{tpu_custom_call.1} parent=0
    _
  %s10 = ssub.s32 1, %s8
  %s11 = scalar_select 0, %s10, %s8
  %v12 = vstv %s6
  %13 = vst [vmem:[#allocation2] sm:$0x1] %v12
  $region1: #{tpu_custom_call.1} parent=0
    #allocation3 [shape = 'u8[8192]{0}', space=vmem, size = 0x2000, scoped, tag = 'input window, operand 0, single buffered']
    #allocation4 [shape = 's32[1]{0}', space=sflag, size = 0x4, scoped, tag = 'scoped memory for tpu_custom_call.1']
    #allocation5 [shape = 'u8[8192]{0}', space=vmem, size = 0x2000, scoped, tag = 'input window, operand 1, single buffered']
    #allocation6 [shape = 's32[1]{0}', space=sflag, size = 0x4, scoped, tag = 'scoped memory for tpu_custom_call.1']
    #allocation7 [shape = 'u8[8192]{0}', space=vmem, size = 0x2000, scoped, tag = 'input window, operand 3, single buffered']
    %14 = vsyncpa [#allocation4], 0
    %15 = vsyncpa [#allocation6], 0
    // Predicated region
    $region2: #{tpu_custom_call.1} parent=1 // pred_check
      _
    $region3: #{tpu_custom_call.1} parent=1 // pred_check_branch
      %17 = sbr.rel (0) target = $region5
    $region4: #{tpu_custom_call.1} parent=1 // pred_region
      %s19 = ssub.s32 256, 256
      %20 = vsyncadd [#allocation4], %s19
      %s21 = sshll.u32 [#allocation3], 4
      %s22 = int_to_ptr.vmem [resolvable:$true] %s21
      %27 = dma.hbm_to_vmem [thread:$0]  %s0, 256, %s22, [#allocation4], 128, 128, 8
    $region5: #{tpu_custom_call.1} parent=1 // pred_fallthru
      _
    // Predicated region
    $region6: #{tpu_custom_call.1} parent=1 // pred_check
      _
    $region7: #{tpu_custom_call.1} parent=1 // pred_check_branch
      %29 = sbr.rel (0) target = $region9
    $region8: #{tpu_custom_call.1} parent=1 // pred_region
      %s31 = ssub.s32 256, 256
      %32 = vsyncadd [#allocation6], %s31
      %s33 = sshll.u32 [#allocation5], 4
      %s34 = int_to_ptr.vmem [resolvable:$true] %s33
      %39 = dma.hbm_to_vmem [thread:$0]  %s1, 256, %s34, [#allocation6], 64, 64, 4
    $region9: #{tpu_custom_call.1} parent=1 // pred_fallthru
      _
    // Predicated region
    $region10: #{tpu_custom_call.1} parent=1 // pred_check
      _
    $region11: #{tpu_custom_call.1} parent=1 // pred_check_branch
      %41 = sbr.rel (0) target = $region13
    $region12: #{tpu_custom_call.1} parent=1 // pred_region
      _
    $region13: #{tpu_custom_call.1} parent=1 // pred_fallthru
      _
    // Predicated region
    $region14: #{tpu_custom_call.1} parent=1 // pred_check
      _
    $region15: #{tpu_custom_call.1} parent=1 // pred_check_branch
      %43 = sbr.rel (0) target = $region17
    $region16: #{tpu_custom_call.1} parent=1 // pred_region
      %s45 = ssub.s32 256, 256
      %46 = vsyncadd [#allocation6], %s45
      %s47 = sshll.u32 [#allocation7], 4
      %s48 = int_to_ptr.vmem [resolvable:$true] %s47
      %53 = dma.hbm_to_vmem [thread:$0]  %s3, 256, %s48, [#allocation6], 64, 64, 4
    $region17: #{tpu_custom_call.1} parent=1 // pred_fallthru
      _
    // Predicated region
    $region18: #{tpu_custom_call.1} parent=1 // pred_check
      _
    $region19: #{tpu_custom_call.1} parent=1 // pred_check_branch
      %55 = sbr.rel (0) target = $region21
    $region20: #{tpu_custom_call.1} parent=1 // pred_region
      _
    $region21: #{tpu_custom_call.1} parent=1 // pred_fallthru
      _
    // Predicated region
    $region22: #{tpu_custom_call.1} parent=1 // pred_check
      _
    $region23: #{tpu_custom_call.1} parent=1 // pred_check_branch
      %57 = sbr.rel (0) target = $region25
    $region24: #{tpu_custom_call.1} parent=1 // pred_region
      _
    $region25: #{tpu_custom_call.1} parent=1 // pred_fallthru
      _
    // Predicated region
    $region26: #{tpu_custom_call.1} parent=1 // pred_check
      _
    $region27: #{tpu_custom_call.1} parent=1 // pred_check_branch
      %59 = sbr.rel (0) target = $region29
    $region28: #{tpu_custom_call.1} parent=1 // pred_region
      _
    $region29: #{tpu_custom_call.1} parent=1 // pred_fallthru
      _
    // Predicated region
    $region30: #{tpu_custom_call.1} parent=1 // pred_check
      _
    $region31: #{tpu_custom_call.1} parent=1 // pred_check_branch
      %61 = sbr.rel (0) target = $region33
    $region32: #{tpu_custom_call.1} parent=1 // pred_region
      %62 = dma.done [#allocation4], 256
    $region33: #{tpu_custom_call.1} parent=1 // pred_fallthru
      _
    // Predicated region
    $region34: #{tpu_custom_call.1} parent=1 // pred_check
      _
    $region35: #{tpu_custom_call.1} parent=1 // pred_check_branch
      %64 = sbr.rel (0) target = $region37
    $region36: #{tpu_custom_call.1} parent=1 // pred_region
      %65 = dma.done [#allocation6], 256
    $region37: #{tpu_custom_call.1} parent=1 // pred_fallthru
      _
    // Predicated region
    $region38: #{tpu_custom_call.1} parent=1 // pred_check
      _
    $region39: #{tpu_custom_call.1} parent=1 // pred_check_branch
      %67 = sbr.rel (0) target = $region41
    $region40: #{tpu_custom_call.1} parent=1 // pred_region
      %68 = dma.done [#allocation6], 256
    $region41: #{tpu_custom_call.1} parent=1 // pred_fallthru
      _
    %v70 = vld [vmem:[#allocation3] sm:$0xff]
    %v71 = vld [vmem:[#allocation3 + $0x8] sm:$0xff]
    %v72 = vld [vmem:[#allocation5] sm:$0xf]
    %v73 = vld [vmem:[#allocation5 + $0x4] sm:$0xf]
    %v74 = vld [vmem:[#allocation5 + $0x8] sm:$0xf]
    %v75 = vld [vmem:[#allocation5 + $0xc] sm:$0xf]
    %v76 = vld [vmem:[%s2] sm:$0x1]
    %v77 = vpack.c.bf16 %v71, %v70
    %v79 = vlaneseq
    %v80 = vshrl.u32 %v79, 7
    %v81 = vsub.s32 0, %v80
    %v82 = vrot.slane %v76, %v81
    %v88 = vunpack.c.l.b16 %v72
    %v89 = vunpack.c.l.b16 %v73
    %v90 = vunpack.c.l.b16 %v74
    %v91 = vunpack.c.l.b16 %v75
    %v92 = vpack.c.b16 %v89, %v88
    %v93 = vpack.c.b16 %v91, %v90
    %vm96 = vcmask 261120
    %v98 = vsel %vm96, %v77, 0
    %100 = vmatprep.subr.bf16.mxu0 0
    %101 = vmatpush1.bf16.msra.mxu0 %v92
    %102 = vmatprep.subr.bf16.mxu0 0
    %103 = vmatpush1.bf16.msra.mxu0 %v93
    %104 = vmatprep.subr.bf16.mxu0 0
    %105 = vmatpush1.bf16.msra.mxu0 0
    %106 = vmatprep.subr.bf16.mxu0 0
    %107 = vmatpush1.bf16.msra.mxu0 0
    %108 = vmatprep.subr.bf16.mxu0 0
    %109 = vmatpush1.bf16.msra.mxu0 0
    %110 = vmatprep.subr.bf16.mxu0 0
    %111 = vmatpush1.bf16.msra.mxu0 0
    %112 = vmatprep.subr.bf16.mxu0 0
    %113 = vmatpush1.bf16.msra.mxu0 0
    %114 = vmatprep.subr.bf16.mxu0 0
    %115 = vmatpush1.bf16.msra.mxu0 0
    %116 = vmatprep.subr.bf16.mxu0 0
    %117 = vmatpush1.bf16.msra.mxu0 0
    %118 = vmatprep.subr.bf16.mxu0 0
    %119 = vmatpush1.bf16.msra.mxu0 0
    %120 = vmatprep.subr.bf16.mxu0 0
    %121 = vmatpush1.bf16.msra.mxu0 0
    %122 = vmatprep.subr.bf16.mxu0 0
    %123 = vmatpush1.bf16.msra.mxu0 0
    %124 = vmatprep.subr.bf16.mxu0 0
    %125 = vmatpush1.bf16.msra.mxu0 0
    %126 = vmatprep.subr.bf16.mxu0 0
    %127 = vmatpush1.bf16.msra.mxu0 0
    %128 = vmatprep.subr.bf16.mxu0 0
    %129 = vmatpush1.bf16.msra.mxu0 0
    %130 = vmatprep.subr.bf16.mxu0 0
    %131 = vmatpush1.bf16.msra.mxu0 0
    %132 = vmatprep.mubr.bf16.mxu0 0
    %133 = vmatmul.mubr.bf16.gmra.mrb[0].mxu0 %v98
    %v134 = vpop.f32.mrb[0].mxu0
    %v135 = vadd.f32 %v82, %v134
    %v136 = vpop.f32.mrb[0].mxu0
    %v137 = vpop.f32.mrb[0].mxu0
    %v138 = vadd.f32 %v82, %v137
    %v139 = vpop.f32.mrb[0].mxu0
    %140 = vdwg.mxu0
    %v141 = vmax.f32 %v135, 0.0
    %v142 = vmax.f32 %v138, 0.0
    %v143 = vld [vmem:[#allocation7] sm:$0xf]
    %v144 = vld [vmem:[#allocation7 + $0x4] sm:$0xf]
    %v145 = vld [vmem:[#allocation7 + $0x8] sm:$0xf]
    %v146 = vld [vmem:[#allocation7 + $0xc] sm:$0xf]
    %v147 = vld [vmem:[%s4] sm:$0x1]
    %v148 = vpack.c.bf16 %v142, %v141
    %v150 = vlaneseq
    %v151 = vshrl.u32 %v150, 7
    %v152 = vsub.s32 0, %v151
    %v153 = vrot.slane %v147, %v152
    %v159 = vunpack.c.l.b16 %v143
    %v160 = vunpack.c.l.b16 %v144
    %v161 = vunpack.c.l.b16 %v145
    %v162 = vunpack.c.l.b16 %v146
    %v163 = vpack.c.b16 %v160, %v159
    %v164 = vpack.c.b16 %v162, %v161
    %v168 = vsel %vm96, %v148, 0
    %170 = vmatprep.subr.bf16.mxu0 0
    %171 = vmatpush1.bf16.msra.mxu0 %v163
    %172 = vmatprep.subr.bf16.mxu0 0
    %173 = vmatpush1.bf16.msra.mxu0 %v164
    %174 = vmatprep.subr.bf16.mxu0 0
    %175 = vmatpush1.bf16.msra.mxu0 0
    %176 = vmatprep.subr.bf16.mxu0 0
    %177 = vmatpush1.bf16.msra.mxu0 0
    %178 = vmatprep.subr.bf16.mxu0 0
    %179 = vmatpush1.bf16.msra.mxu0 0
    %180 = vmatprep.subr.bf16.mxu0 0
    %181 = vmatpush1.bf16.msra.mxu0 0
    %182 = vmatprep.subr.bf16.mxu0 0
    %183 = vmatpush1.bf16.msra.mxu0 0
    %184 = vmatprep.subr.bf16.mxu0 0
    %185 = vmatpush1.bf16.msra.mxu0 0
    %186 = vmatprep.subr.bf16.mxu0 0
    %187 = vmatpush1.bf16.msra.mxu0 0
    %188 = vmatprep.subr.bf16.mxu0 0
    %189 = vmatpush1.bf16.msra.mxu0 0
    %190 = vmatprep.subr.bf16.mxu0 0
    %191 = vmatpush1.bf16.msra.mxu0 0
    %192 = vmatprep.subr.bf16.mxu0 0
    %193 = vmatpush1.bf16.msra.mxu0 0
    %194 = vmatprep.subr.bf16.mxu0 0
    %195 = vmatpush1.bf16.msra.mxu0 0
    %196 = vmatprep.subr.bf16.mxu0 0
    %197 = vmatpush1.bf16.msra.mxu0 0
    %198 = vmatprep.subr.bf16.mxu0 0
    %199 = vmatpush1.bf16.msra.mxu0 0
    %200 = vmatprep.subr.bf16.mxu0 0
    %201 = vmatpush1.bf16.msra.mxu0 0
    %202 = vmatprep.mubr.bf16.mxu0 0
    %203 = vmatmul.mubr.bf16.gmra.mrb[0].mxu0 %v168
    %v204 = vpop.f32.mrb[0].mxu0
    %v205 = vadd.f32 %v153, %v204
    %v206 = vpop.f32.mrb[0].mxu0
    %v207 = vpop.f32.mrb[0].mxu0
    %v208 = vadd.f32 %v153, %v207
    %v209 = vpop.f32.mrb[0].mxu0
    %210 = vdwg.mxu0
    %v211 = vmax.f32 %v205, 0.0
    %v212 = vmax.f32 %v208, 0.0
    %v213 = vld [vmem:[%s5] sm:$0x1]
    %v214 = vld [vmem:[#allocation2] sm:$0x1]
    %v216 = vlaneseq
    %v217 = vshrl.u32 %v216, 7
    %v218 = vsub.s32 0, %v217
    %v219 = vrot.slane %v213, %v218
    %v221 = vmul.f32 %v211, %v219
    %v222 = vmul.f32 %v212, %v219
    %v223 = vsel %vm96, %v221, 0.0
    %224 = vadd.xlane.f32.xlu0 %v223
    %v225 = vpop.xlane.xlu0 %224
    %v226 = vsel %vm96, %v222, 0.0
    %227 = vadd.xlane.f32.xlu0 %v226
    %v228 = vpop.xlane.xlu0 %227
    %v230 = vlaneseq
    %v231 = vshrl.u32 %v230, 7
    %v232 = vsub.s32 0, %v231
    %v233 = vrot.slane %v214, %v232
    %v235 = vadd.f32 %v225, %v233
    %v236 = vadd.f32 %v228, %v233
    %vm237 = vcmask 7168
    %238 = vst.msk [vmem:[%s7] sm:$0xff] %vm237, %v235
    %239 = vst.msk [vmem:[%s7 + $0x8] sm:$0xff] %vm237, %v236
    // Predicated region
    $region42: #{tpu_custom_call.1} parent=1 // pred_check
      _
    $region43: #{tpu_custom_call.1} parent=1 // pred_check_branch
      %241 = sbr.rel (0) target = $region45
    $region44: #{tpu_custom_call.1} parent=1 // pred_region
      _
    $region45: #{tpu_custom_call.1} parent=1 // pred_fallthru
      _
    // Predicated region
    $region46: #{tpu_custom_call.1} parent=1 // pred_check
      _
    $region47: #{tpu_custom_call.1} parent=1 // pred_check_branch
      %243 = sbr.rel (0) target = $region49
    $region48: #{tpu_custom_call.1} parent=1 // pred_region
      _
    $region49: #{tpu_custom_call.1} parent=1 // pred_fallthru
      _
    %244 = vsyncpa [#allocation4], 1
    %245 = vsyncpa [#allocation6], 1

</llo_original>
